<compile_context>
chip_gen: v5e
topology: v5e:2x2
jax: 0.10.0
libtpu: 0.0.40
codegen_flags: <defaults>
</compile_context>

<pallas_src>
import jax
import jax.numpy as jnp
import numpy as np
from jax.experimental import pallas as pl
from jax.experimental.pallas import tpu as pltpu


def _make_kernel(H, D, M, block_t, t_valid, t_padded):
    num_t_blocks = t_padded // block_t

    def kernel(mem_ref, state_ref, annot_ref,
               w_h_ref, w_a_ref, w_x_ref, att_vb_ref, gru_b_ref,
               out_ref, ctx_ref, align_ref,
               pqgh_scr, gxm_scr, m_scr, l_scr, ctx_scr, scores_scr):
        t = pl.program_id(1)
        nt = pl.num_programs(1)

        mem = mem_ref[...]                       # (b, M)      f32
        h = state_ref[...]                       # (b, H)      f32
        annots = annot_ref[...]                  # (b, bt, D)  bf16
        b = h.shape[0]
        bt = annots.shape[1]

        v = att_vb_ref[0:1, :]                   # (1, H)   f32
        b_att = att_vb_ref[1:2, :]               # (1, H)   f32  (= bq + ba, pre-summed)
        b_ih = gru_b_ref[0:1, :]                 # (1, 3H)  f32
        b_hh = gru_b_ref[1:2, :]                 # (1, 3H)  f32

        # ---- first T step: cache h/mem projections, reset online-softmax state ----
        @pl.when(t == 0)
        def _():
            # fused h @ [Wq | Wh]: one MXU weight push instead of two.
            pqgh_scr[...] = jnp.dot(h.astype(jnp.bfloat16), w_h_ref[...],
                                    preferred_element_type=jnp.float32)
            gxm_scr[...] = jnp.dot(mem.astype(jnp.bfloat16), w_x_ref[:M, :],
                                   preferred_element_type=jnp.float32) + b_ih
            m_scr[...] = jnp.full_like(m_scr, -jnp.inf)
            l_scr[...] = jnp.zeros_like(l_scr)
            ctx_scr[...] = jnp.zeros_like(ctx_scr)

        # ---- Bahdanau scores for this T tile ----
        # Lane-dense (b*bt, D) @ (D, H) bf16 matmul; bt is a multiple of 8 (or the
        # full padded T) so the reshape stays copy-free.
        pa = jnp.dot(annots.reshape(b * bt, D), w_a_ref[...],
                     preferred_element_type=jnp.float32).reshape(b, bt, H)
        pq = pqgh_scr[:, :H]
        e = jnp.tanh(pq[:, None, :] + pa + b_att[None, :, :])   # (b, bt, H) f32
        s = jnp.sum(e * v[None, :, :], axis=-1)                 # (b, bt)    f32

        if t_padded != t_valid:
            # wrapper zero-pads T; mask padded columns out of the softmax
            col = jax.lax.broadcasted_iota(jnp.int32, (b, bt), 1) + t * block_t
            s = jnp.where(col < t_valid, s, -jnp.inf)

        # stash raw scores (dynamic index only on the leading scratch dim)
        scores_scr[t] = s

        # ---- online softmax + context accumulation (flash-attention style) ----
        m_prev = m_scr[...]
        m_new = jnp.maximum(m_prev, jnp.max(s, axis=-1, keepdims=True))
        alpha = jnp.exp(m_prev - m_new)
        p = jnp.exp(s - m_new)                                   # (b, bt)
        l_scr[...] = alpha * l_scr[...] + jnp.sum(p, axis=-1, keepdims=True)
        # VPU broadcast-multiply + sublane reduce per tile (no M=1 MXU matmuls);
        # bounds the (b, bt, D) temporary to one T tile.
        ctx_scr[...] = (alpha * ctx_scr[...]
                        + jnp.sum(p[:, :, None] * annots.astype(jnp.float32), axis=1))
        m_scr[...] = m_new

        # ---- last T step: normalize, fused GRU cell, write outputs ----
        @pl.when(t == nt - 1)
        def _():
            inv_l = 1.0 / l_scr[...]                             # exact divide
            m_fin = m_scr[...]
            ctx = ctx_scr[...] * inv_l                           # (b, D)

            gx = gxm_scr[...] + jnp.dot(ctx.astype(jnp.bfloat16), w_x_ref[M:, :],
                                        preferred_element_type=jnp.float32)
            gh = pqgh_scr[:, H:] + b_hh
            r = jax.nn.sigmoid(gx[:, :H] + gh[:, :H])
            z = jax.nn.sigmoid(gx[:, H:2 * H] + gh[:, H:2 * H])
            n = jnp.tanh(gx[:, 2 * H:] + r * gh[:, 2 * H:])
            h_new = (1.0 - z) * n + z * h

            out_ref[...] = h_new.astype(out_ref.dtype)
            ctx_ref[...] = ctx.astype(ctx_ref.dtype)
            # alignment writeback with static, lane-dense slices (num_t_blocks is
            # a compile-time constant, loop fully unrolled)
            for k in range(num_t_blocks):
                align_ref[:, k * block_t:(k + 1) * block_t] = (
                    jnp.exp(scores_scr[k] - m_fin) * inv_l).astype(align_ref.dtype)

    return kernel


def attention_rnn_forward(memory, rnn_state, annotations, params,
                          *, block_b=None, block_t=None):
    """Pallas-call wrapper.

    Grid = (batch blocks ["parallel"], time blocks ["arbitrary"]).  Weights use
    constant index_maps and stay VMEM-resident across the whole grid.
    """
    B, M = memory.shape
    _, H = rnn_state.shape
    _, T, D = annotations.shape

    # ---- batch tiling (>= 2 grid steps when B allows, so v7x megacore can shard) ----
    if block_b is None:
        block_b = B // 2 if (B >= 16 and B % 16 == 0) else B
    assert B % block_b == 0, "B must be divisible by block_b (pad batch in the caller)"
    assert block_b == B or block_b % 8 == 0, "block_b must be a multiple of 8 (f32 sublanes)"

    # ---- time tiling (bounds the double-buffered bf16 annotation block) ----
    if block_t is None:
        block_t = T if T <= 256 else 256
    block_t = max(8, ((block_t + 7) // 8) * 8)
    t_padded = ((T + block_t - 1) // block_t) * block_t
    assert block_t == t_padded or block_t % 16 == 0, \
        "partial-T tiles must be a multiple of 16 (bf16 sublane packing)"
    num_t_blocks = t_padded // block_t

    annots = annotations.astype(jnp.bfloat16)          # bf16 stream halves HBM bytes
    if t_padded != T:
        annots = jnp.pad(annots, ((0, 0), (0, t_padded - T), (0, 0)))

    grid = (B // block_b, num_t_blocks)

    # ---- explicit VMEM budget (default scoped limit is only 16/32 MiB) ----
    bfb, f32b = 2, 4
    est = (2 * block_b * block_t * D * bfb                               # annots (2 bufs)
           + 2 * ((H * 4 * H + D * H + (M + D) * 3 * H) * bfb
                  + (2 * H + 2 * 3 * H) * f32b)                          # weights
           + 2 * block_b * (M + 2 * H + D + t_padded) * f32b             # io blocks
           + block_b * (7 * H + 2 + D + t_padded) * f32b)                # scratch
    vmem_limit = int(min(64 * 1024 * 1024, max(2 * est + (2 << 20), 16 * 1024 * 1024)))

    kernel = _make_kernel(H, D, M, block_t, T, t_padded)

    out, ctx, align = pl.pallas_call(
        kernel,
        out_shape=(jax.ShapeDtypeStruct((B, H), jnp.float32),       # rnn_output
                   jax.ShapeDtypeStruct((B, D), jnp.float32),       # context
                   jax.ShapeDtypeStruct((B, t_padded), jnp.float32)),  # alignment
        grid=grid,
        in_specs=[
            # per-batch-block data (constant over the time axis)
            pl.BlockSpec((block_b, M), lambda i, t: (i, 0)),
            pl.BlockSpec((block_b, H), lambda i, t: (i, 0)),
            # annotations streamed one (block_b, block_t, D) bf16 tile at a time
            pl.BlockSpec((block_b, block_t, D), lambda i, t: (i, t, 0)),
            # packed weights: constant index_maps -> DMA'd once, VMEM-resident
            pl.BlockSpec((H, 4 * H), lambda i, t: (0, 0)),           # [Wq | Wh]  bf16
            pl.BlockSpec((D, H), lambda i, t: (0, 0)),               # Wa         bf16
            pl.BlockSpec((M + D, 3 * H), lambda i, t: (0, 0)),       # [Wx_mem; Wx_ctx] bf16
            pl.BlockSpec((2, H), lambda i, t: (0, 0)),               # [v ; bq+ba] f32
            pl.BlockSpec((2, 3 * H), lambda i, t: (0, 0)),           # [b_ih ; b_hh] f32
        ],
        out_specs=(
            pl.BlockSpec((block_b, H), lambda i, t: (i, 0)),
            pl.BlockSpec((block_b, D), lambda i, t: (i, 0)),
            pl.BlockSpec((block_b, t_padded), lambda i, t: (i, 0)),
        ),
        scratch_shapes=[
            pltpu.VMEM((block_b, 4 * H), jnp.float32),               # [pq | gh] cache
            pltpu.VMEM((block_b, 3 * H), jnp.float32),               # mem gate cache
            pltpu.VMEM((block_b, 1), jnp.float32),                   # running max
            pltpu.VMEM((block_b, 1), jnp.float32),                   # running denom
            pltpu.VMEM((block_b, D), jnp.float32),                   # context accumulator
            pltpu.VMEM((num_t_blocks, block_b, block_t), jnp.float32),  # raw scores
        ],
        compiler_params=pltpu.CompilerParams(
            dimension_semantics=("parallel", "arbitrary"),
            vmem_limit_bytes=vmem_limit),
    )(memory, rnn_state, annots,
      params["w_h"], params["w_a"], params["w_x"], params["att_vb"], params["gru_b"])

    if t_padded != T:
        align = align[:, :T]
    return out, ctx, align


def make_params(key, out_dim, annot_dim, memory_dim):
    """Deterministic parameter init mirroring the nn.Module __init__ shapes (packed, bf16)."""
    H, D, M = out_dim, annot_dim, memory_dim
    keys = jax.random.split(key, 8)

    def u(k, shape, fan_in):
        bound = 1.0 / np.sqrt(fan_in)
        return jax.random.uniform(k, shape, jnp.float32, -bound, bound)

    # BahdanauAttention: query_layer (H, H), annot_layer (H, D), v (1, H)
    wq = u(keys[0], (H, H), H)
    bq = u(keys[1], (H,), H)
    wa = u(keys[2], (H, D), D)
    ba = u(keys[3], (H,), D)
    v = u(keys[4], (1, H), H)

    # GRUCell: weight_ih (3H, M+D), weight_hh (3H, H), biases (2, 3H) — gate order r, z, n
    w_ih = u(keys[5], (3 * H, M + D), H)
    w_hh = u(keys[6], (3 * H, H), H)
    b = u(keys[7], (2, 3 * H), H)

    return {
        "w_h": jnp.concatenate([wq.T, w_hh.T], axis=1).astype(jnp.bfloat16),  # (H, 4H)
        "w_a": wa.T.astype(jnp.bfloat16),                                     # (D, H)
        "w_x": w_ih.T.astype(jnp.bfloat16),                                   # (M+D, 3H)
        "att_vb": jnp.stack([v[0], bq + ba], axis=0),                         # (2, H)  f32
        "gru_b": b,                                                           # (2, 3H) f32
    }


def reference_forward(memory, rnn_state, annotations, params):
    """Pure-JAX replica of the PyTorch forward (unmasked path) for validation.

    Uses the same bf16-rounded matmul operands as the kernel (and HIGHEST-precision
    f32 contractions) so the comparison tolerance can be tight.
    """
    f32 = jnp.float32
    hp = jax.lax.Precision.HIGHEST
    B, M = memory.shape
    _, H = rnn_state.shape

    w_h = params["w_h"].astype(f32)
    w_a = params["w_a"].astype(f32)
    w_x = params["w_x"].astype(f32)
    v, b_att = params["att_vb"][0], params["att_vb"][1]
    b_ih, b_hh = params["gru_b"][0], params["gru_b"][1]

    ann = annotations.astype(jnp.bfloat16).astype(f32)
    h_b = rnn_state.astype(jnp.bfloat16).astype(f32)
    mem_b = memory.astype(jnp.bfloat16).astype(f32)

    pqgh = jnp.dot(h_b, w_h, precision=hp)                                   # (B, 4H)
    pa = jnp.einsum('btd,dh->bth', ann, w_a, precision=hp)
    scores = jnp.sum(jnp.tanh(pqgh[:, None, :H] + pa + b_att) * v, axis=-1)
    align = jax.nn.softmax(scores, axis=-1)
    ctx = jnp.einsum('bt,btd->bd', align, ann, precision=hp)

    ctx_b = ctx.astype(jnp.bfloat16).astype(f32)
    gx = (jnp.dot(mem_b, w_x[:M], precision=hp)
          + jnp.dot(ctx_b, w_x[M:], precision=hp) + b_ih)
    gh = pqgh[:, H:] + b_hh
    r = jax.nn.sigmoid(gx[:, :H] + gh[:, :H])
    z = jax.nn.sigmoid(gx[:, H:2 * H] + gh[:, H:2 * H])
    n = jnp.tanh(gx[:, 2 * H:] + r * gh[:, 2 * H:])
    h_new = (1.0 - z) * n + z * rnn_state
    return h_new, ctx, align


if __name__ == "__main__":
    B, T = 2, 8
    out_dim, annot_dim, memory_dim = 32, 32, 32

    key = jax.random.PRNGKey(0)
    k_mem, k_state, k_annot, k_params = jax.random.split(key, 4)

    memory = jax.random.normal(k_mem, (B, memory_dim), jnp.float32)
    rnn_state = jax.random.normal(k_state, (B, out_dim), jnp.float32)
    annotations = jax.random.normal(k_annot, (B, T, annot_dim), jnp.float32)
    params = make_params(k_params, out_dim, annot_dim, memory_dim)

    rnn_out, context, alignment = attention_rnn_forward(memory, rnn_state, annotations, params)
    jax.block_until_ready((rnn_out, context, alignment))

    ref_out, ref_ctx, ref_align = reference_forward(memory, rnn_state, annotations, params)
    # 10x tighter than before: softmax uses an exact divide and both sides see the same
    # bf16-rounded matmul operands; the slack covers f32 accumulation-order differences
    # and the bf16 re-rounding of the context fed to the GRU input projection.
    np.testing.assert_allclose(np.asarray(rnn_out), np.asarray(ref_out), rtol=1e-3, atol=1e-3)
    np.testing.assert_allclose(np.asarray(context), np.asarray(ref_ctx), rtol=1e-3, atol=1e-3)
    np.testing.assert_allclose(np.asarray(alignment), np.asarray(ref_align), rtol=1e-3, atol=1e-3)

    print("KERNEL_OK")
</pallas_src>

<mosaic_0001>
module attributes {stable_mosaic.version = 11 : i64} {
  func.func @kernel(%arg0: i32, %arg1: i32, %arg2: memref<2x32xf32, #tpu.memory_space<vmem>>, %arg3: memref<2x32xf32, #tpu.memory_space<vmem>>, %arg4: memref<2x8x32xbf16, #tpu.memory_space<vmem>>, %arg5: memref<32x128xbf16, #tpu.memory_space<vmem>>, %arg6: memref<32x32xbf16, #tpu.memory_space<vmem>>, %arg7: memref<64x96xbf16, #tpu.memory_space<vmem>>, %arg8: memref<2x32xf32, #tpu.memory_space<vmem>>, %arg9: memref<2x96xf32, #tpu.memory_space<vmem>>, %arg10: memref<2x32xf32, #tpu.memory_space<vmem>>, %arg11: memref<2x32xf32, #tpu.memory_space<vmem>>, %arg12: memref<2x8xf32, #tpu.memory_space<vmem>>, %arg13: memref<2x128xf32, #tpu.memory_space<vmem>>, %arg14: memref<2x96xf32, #tpu.memory_space<vmem>>, %arg15: memref<2x1xf32, #tpu.memory_space<vmem>>, %arg16: memref<2x1xf32, #tpu.memory_space<vmem>>, %arg17: memref<2x32xf32, #tpu.memory_space<vmem>>, %arg18: memref<1x2x8xf32, #tpu.memory_space<vmem>>) attributes {dimension_semantics = [#tpu.dimension_semantics<parallel>, #tpu.dimension_semantics<arbitrary>], iteration_bounds = array<i64: 1, 1>, scalar_prefetch = 0 : i64, scratch_operands = 6 : i64, tpu.core_type = #tpu.core_type<tc>, window_params = [{transform_indices = @transform_0, window_bounds = array<i64: 2, 32>}, {transform_indices = @transform_1, window_bounds = array<i64: 2, 32>}, {transform_indices = @transform_2, window_bounds = array<i64: 2, 8, 32>}, {pipeline_mode = #tpu.pipeline_mode<synchronous>, transform_indices = @transform_3, window_bounds = array<i64: 32, 128>}, {pipeline_mode = #tpu.pipeline_mode<synchronous>, transform_indices = @transform_4, window_bounds = array<i64: 32, 32>}, {pipeline_mode = #tpu.pipeline_mode<synchronous>, transform_indices = @transform_5, window_bounds = array<i64: 64, 96>}, {pipeline_mode = #tpu.pipeline_mode<synchronous>, transform_indices = @transform_6, window_bounds = array<i64: 2, 32>}, {pipeline_mode = #tpu.pipeline_mode<synchronous>, transform_indices = @transform_7, window_bounds = array<i64: 2, 96>}, {transform_indices = @transform_8, window_bounds = array<i64: 2, 32>}, {transform_indices = @transform_9, window_bounds = array<i64: 2, 32>}, {transform_indices = @transform_10, window_bounds = array<i64: 2, 8>}]} {
    %c0 = arith.constant 0 : index
    %c0_0 = arith.constant 0 : index
    %0 = vector.load %arg2[%c0, %c0_0] : memref<2x32xf32, #tpu.memory_space<vmem>>, vector<2x32xf32>
    %c0_1 = arith.constant 0 : index
    %c0_2 = arith.constant 0 : index
    %1 = vector.load %arg3[%c0_1, %c0_2] : memref<2x32xf32, #tpu.memory_space<vmem>>, vector<2x32xf32>
    %c0_3 = arith.constant 0 : index
    %c0_4 = arith.constant 0 : index
    %c0_5 = arith.constant 0 : index
    %2 = vector.load %arg4[%c0_3, %c0_4, %c0_5] : memref<2x8x32xbf16, #tpu.memory_space<vmem>>, vector<2x8x32xbf16>
    %c0_6 = arith.constant 0 : index
    %c0_7 = arith.constant 0 : index
    %3 = vector.load %arg8[%c0_6, %c0_7] : memref<2x32xf32, #tpu.memory_space<vmem>>, vector<1x32xf32>
    %c1 = arith.constant 1 : index
    %c0_8 = arith.constant 0 : index
    %4 = vector.load %arg8[%c1, %c0_8] : memref<2x32xf32, #tpu.memory_space<vmem>>, vector<1x32xf32>
    %c0_9 = arith.constant 0 : index
    %c0_10 = arith.constant 0 : index
    %5 = vector.load %arg9[%c0_9, %c0_10] : memref<2x96xf32, #tpu.memory_space<vmem>>, vector<1x96xf32>
    %c1_11 = arith.constant 1 : index
    %c0_12 = arith.constant 0 : index
    %6 = vector.load %arg9[%c1_11, %c0_12] : memref<2x96xf32, #tpu.memory_space<vmem>>, vector<1x96xf32>
    %c0_i32 = arith.constant 0 : i32
    %7 = arith.cmpi eq, %arg1, %c0_i32 : i32
    %8 = arith.extui %7 : i1 to i32
    %c0_i32_13 = arith.constant 0 : i32
    %9 = arith.cmpi ne, %8, %c0_i32_13 : i32
    scf.if %9 {
      %59 = arith.truncf %1 : vector<2x32xf32> to vector<2x32xbf16>
      %c0_38 = arith.constant 0 : index
      %c0_39 = arith.constant 0 : index
      %60 = vector.load %arg5[%c0_38, %c0_39] : memref<32x128xbf16, #tpu.memory_space<vmem>>, vector<32x128xbf16>
      %cst_40 = arith.constant dense<0.000000e+00> : vector<2x128xf32>
      %61 = tpu.matmul %59, %60, %cst_40 {dimension_numbers = #tpu.dot_dimension_numbers<[1], [0], [0], [1], [0, 0, 1, 1], [], []>} : vector<2x32xbf16>, vector<32x128xbf16>, vector<2x128xf32> -> vector<2x128xf32>
      %c0_41 = arith.constant 0 : index
      %c0_42 = arith.constant 0 : index
      %62 = vector.load %arg13[%c0_41, %c0_42] : memref<2x128xf32, #tpu.memory_space<vmem>>, vector<2x128xf32>
      tpu.vector_store %arg13[%c0_41, %c0_42], %61 {strides = array<i32>} : memref<2x128xf32, #tpu.memory_space<vmem>>, vector<2x128xf32>,
      %63 = arith.truncf %0 : vector<2x32xf32> to vector<2x32xbf16>
      %c0_43 = arith.constant 0 : index
      %c0_44 = arith.constant 0 : index
      %64 = vector.load %arg7[%c0_43, %c0_44] : memref<64x96xbf16, #tpu.memory_space<vmem>>, vector<32x96xbf16>
      %cst_45 = arith.constant dense<0.000000e+00> : vector<2x96xf32>
      %65 = tpu.matmul %63, %64, %cst_45 {dimension_numbers = #tpu.dot_dimension_numbers<[1], [0], [0], [1], [0, 0, 1, 1], [], []>} : vector<2x32xbf16>, vector<32x96xbf16>, vector<2x96xf32> -> vector<2x96xf32>
      %66 = vector.broadcast %5 : vector<1x96xf32> to vector<2x96xf32>
      %67 = arith.addf %65, %66 : vector<2x96xf32>
      %c0_46 = arith.constant 0 : index
      %c0_47 = arith.constant 0 : index
      %68 = vector.load %arg14[%c0_46, %c0_47] : memref<2x96xf32, #tpu.memory_space<vmem>>, vector<2x96xf32>
      tpu.vector_store %arg14[%c0_46, %c0_47], %67 {strides = array<i32>} : memref<2x96xf32, #tpu.memory_space<vmem>>, vector<2x96xf32>,
      %cst_48 = arith.constant 0xFF800000 : f32
      %69 = vector.broadcast %cst_48 : f32 to vector<2x1xf32>
      %c0_49 = arith.constant 0 : index
      %c0_50 = arith.constant 0 : index
      %70 = vector.load %arg15[%c0_49, %c0_50] : memref<2x1xf32, #tpu.memory_space<vmem>>, vector<2x1xf32>
      tpu.vector_store %arg15[%c0_49, %c0_50], %69 {strides = array<i32>} : memref<2x1xf32, #tpu.memory_space<vmem>>, vector<2x1xf32>,
      %cst_51 = arith.constant 0.000000e+00 : f32
      %71 = vector.broadcast %cst_51 : f32 to vector<2x1xf32>
      %c0_52 = arith.constant 0 : index
      %c0_53 = arith.constant 0 : index
      %72 = vector.load %arg16[%c0_52, %c0_53] : memref<2x1xf32, #tpu.memory_space<vmem>>, vector<2x1xf32>
      tpu.vector_store %arg16[%c0_52, %c0_53], %71 {strides = array<i32>} : memref<2x1xf32, #tpu.memory_space<vmem>>, vector<2x1xf32>,
      %cst_54 = arith.constant 0.000000e+00 : f32
      %73 = vector.broadcast %cst_54 : f32 to vector<2x32xf32>
      %c0_55 = arith.constant 0 : index
      %c0_56 = arith.constant 0 : index
      %74 = vector.load %arg17[%c0_55, %c0_56] : memref<2x32xf32, #tpu.memory_space<vmem>>, vector<2x32xf32>
      tpu.vector_store %arg17[%c0_55, %c0_56], %73 {strides = array<i32>} : memref<2x32xf32, #tpu.memory_space<vmem>>, vector<2x32xf32>,
    } else {
    }
    %10 = vector.shape_cast %2 : vector<2x8x32xbf16> to vector<16x32xbf16>
    %c0_14 = arith.constant 0 : index
    %c0_15 = arith.constant 0 : index
    %11 = vector.load %arg6[%c0_14, %c0_15] : memref<32x32xbf16, #tpu.memory_space<vmem>>, vector<32x32xbf16>
    %cst = arith.constant dense<0.000000e+00> : vector<16x32xf32>
    %12 = tpu.matmul %10, %11, %cst {dimension_numbers = #tpu.dot_dimension_numbers<[1], [0], [0], [1], [0, 0, 1, 1], [], []>} : vector<16x32xbf16>, vector<32x32xbf16>, vector<16x32xf32> -> vector<16x32xf32>
    %13 = vector.shape_cast %12 : vector<16x32xf32> to vector<2x8x32xf32>
    %c0_16 = arith.constant 0 : index
    %c0_17 = arith.constant 0 : index
    %14 = vector.load %arg13[%c0_16, %c0_17] : memref<2x128xf32, #tpu.memory_space<vmem>>, vector<2x32xf32>
    %15 = vector.shape_cast %14 : vector<2x32xf32> to vector<2x1x32xf32>
    %16 = vector.broadcast %15 : vector<2x1x32xf32> to vector<2x8x32xf32>
    %17 = arith.addf %16, %13 : vector<2x8x32xf32>
    %18 = vector.shape_cast %4 : vector<1x32xf32> to vector<1x1x32xf32>
    %19 = vector.broadcast %18 : vector<1x1x32xf32> to vector<2x8x32xf32>
    %20 = arith.addf %17, %19 : vector<2x8x32xf32>
    %21 = math.tanh %20 : vector<2x8x32xf32>
    %22 = vector.shape_cast %3 : vector<1x32xf32> to vector<1x1x32xf32>
    %23 = vector.broadcast %22 : vector<1x1x32xf32> to vector<2x8x32xf32>
    %24 = arith.mulf %21, %23 : vector<2x8x32xf32>
    %cst_18 = arith.constant dense<0.000000e+00> : vector<2x8xf32>
    %25 = vector.multi_reduction <add>, %24, %cst_18 [2] : vector<2x8x32xf32> to vector<2x8xf32>
    %26 = arith.index_cast %arg1 : i32 to index
    %c0_19 = arith.constant 0 : index
    %c0_20 = arith.constant 0 : index
    %27 = vector.load %arg18[%26, %c0_19, %c0_20] : memref<1x2x8xf32, #tpu.memory_space<vmem>>, vector<1x2x8xf32>
    %28 = vector.shape_cast %27 : vector<1x2x8xf32> to vector<2x8xf32>
    %29 = vector.shape_cast %25 : vector<2x8xf32> to vector<1x2x8xf32>
    tpu.vector_store %arg18[%26, %c0_19, %c0_20], %29 {strides = array<i32>} : memref<1x2x8xf32, #tpu.memory_space<vmem>>, vector<1x2x8xf32>,
    %c0_21 = arith.constant 0 : index
    %c0_22 = arith.constant 0 : index
    %30 = vector.load %arg15[%c0_21, %c0_22] : memref<2x1xf32, #tpu.memory_space<vmem>>, vector<2x1xf32>
    %cst_23 = arith.constant dense<0xFF800000> : vector<2xf32>
    %31 = vector.multi_reduction <maximumf>, %25, %cst_23 [1] : vector<2x8xf32> to vector<2xf32>
    %32 = vector.shape_cast %31 : vector<2xf32> to vector<2x1xf32>
    %33 = arith.maximumf %30, %32 : vector<2x1xf32>
    %34 = arith.subf %30, %33 : vector<2x1xf32>
    %35 = math.exp %34 : vector<2x1xf32>
    %36 = vector.broadcast %33 : vector<2x1xf32> to vector<2x8xf32>
    %37 = arith.subf %25, %36 : vector<2x8xf32>
    %38 = math.exp %37 : vector<2x8xf32>
    %c0_24 = arith.constant 0 : index
    %c0_25 = arith.constant 0 : index
    %39 = vector.load %arg16[%c0_24, %c0_25] : memref<2x1xf32, #tpu.memory_space<vmem>>, vector<2x1xf32>
    %40 = arith.mulf %35, %39 : vector<2x1xf32>
    %cst_26 = arith.constant dense<0.000000e+00> : vector<2xf32>
    %41 = vector.multi_reduction <add>, %38, %cst_26 [1] : vector<2x8xf32> to vector<2xf32>
    %42 = vector.shape_cast %41 : vector<2xf32> to vector<2x1xf32>
    %43 = arith.addf %40, %42 : vector<2x1xf32>
    %c0_27 = arith.constant 0 : index
    %c0_28 = arith.constant 0 : index
    %44 = vector.load %arg16[%c0_27, %c0_28] : memref<2x1xf32, #tpu.memory_space<vmem>>, vector<2x1xf32>
    tpu.vector_store %arg16[%c0_27, %c0_28], %43 {strides = array<i32>} : memref<2x1xf32, #tpu.memory_space<vmem>>, vector<2x1xf32>,
    %c0_29 = arith.constant 0 : index
    %c0_30 = arith.constant 0 : index
    %45 = vector.load %arg17[%c0_29, %c0_30] : memref<2x32xf32, #tpu.memory_space<vmem>>, vector<2x32xf32>
    %46 = vector.broadcast %35 : vector<2x1xf32> to vector<2x32xf32>
    %47 = arith.mulf %46, %45 : vector<2x32xf32>
    %48 = vector.shape_cast %38 : vector<2x8xf32> to vector<2x8x1xf32>
    %49 = arith.extf %2 : vector<2x8x32xbf16> to vector<2x8x32xf32>
    %50 = vector.broadcast %48 : vector<2x8x1xf32> to vector<2x8x32xf32>
    %51 = arith.mulf %50, %49 : vector<2x8x32xf32>
    %cst_31 = arith.constant dense<0.000000e+00> : vector<2x32xf32>
    %52 = vector.multi_reduction <add>, %51, %cst_31 [1] : vector<2x8x32xf32> to vector<2x32xf32>
    %53 = arith.addf %47, %52 : vector<2x32xf32>
    %c0_32 = arith.constant 0 : index
    %c0_33 = arith.constant 0 : index
    %54 = vector.load %arg17[%c0_32, %c0_33] : memref<2x32xf32, #tpu.memory_space<vmem>>, vector<2x32xf32>
    tpu.vector_store %arg17[%c0_32, %c0_33], %53 {strides = array<i32>} : memref<2x32xf32, #tpu.memory_space<vmem>>, vector<2x32xf32>,
    %c0_34 = arith.constant 0 : index
    %c0_35 = arith.constant 0 : index
    %55 = vector.load %arg15[%c0_34, %c0_35] : memref<2x1xf32, #tpu.memory_space<vmem>>, vector<2x1xf32>
    tpu.vector_store %arg15[%c0_34, %c0_35], %33 {strides = array<i32>} : memref<2x1xf32, #tpu.memory_space<vmem>>, vector<2x1xf32>,
    %c0_i32_36 = arith.constant 0 : i32
    %56 = arith.cmpi eq, %arg1, %c0_i32_36 : i32
    %57 = arith.extui %56 : i1 to i32
    %c0_i32_37 = arith.constant 0 : i32
    %58 = arith.cmpi ne, %57, %c0_i32_37 : i32
    scf.if %58 {
      %c0_38 = arith.constant 0 : index
      %c0_39 = arith.constant 0 : index
      %59 = vector.load %arg16[%c0_38, %c0_39] : memref<2x1xf32, #tpu.memory_space<vmem>>, vector<2x1xf32>
      %cst_40 = arith.constant 1.000000e+00 : f32
      %60 = vector.broadcast %cst_40 : f32 to vector<2x1xf32>
      %61 = arith.divf %60, %59 : vector<2x1xf32>
      %c0_41 = arith.constant 0 : index
      %c0_42 = arith.constant 0 : index
      %62 = vector.load %arg15[%c0_41, %c0_42] : memref<2x1xf32, #tpu.memory_space<vmem>>, vector<2x1xf32>
      %c0_43 = arith.constant 0 : index
      %c0_44 = arith.constant 0 : index
      %63 = vector.load %arg17[%c0_43, %c0_44] : memref<2x32xf32, #tpu.memory_space<vmem>>, vector<2x32xf32>
      %64 = vector.broadcast %61 : vector<2x1xf32> to vector<2x32xf32>
      %65 = arith.mulf %63, %64 : vector<2x32xf32>
      %c0_45 = arith.constant 0 : index
      %c0_46 = arith.constant 0 : index
      %66 = vector.load %arg14[%c0_45, %c0_46] : memref<2x96xf32, #tpu.memory_space<vmem>>, vector<2x96xf32>
      %67 = arith.truncf %65 : vector<2x32xf32> to vector<2x32xbf16>
      %c32 = arith.constant 32 : index
      %c0_47 = arith.constant 0 : index
      %68 = vector.load %arg7[%c32, %c0_47] : memref<64x96xbf16, #tpu.memory_space<vmem>>, vector<32x96xbf16>
      %cst_48 = arith.constant dense<0.000000e+00> : vector<2x96xf32>
      %69 = tpu.matmul %67, %68, %cst_48 {dimension_numbers = #tpu.dot_dimension_numbers<[1], [0], [0], [1], [0, 0, 1, 1], [], []>} : vector<2x32xbf16>, vector<32x96xbf16>, vector<2x96xf32> -> vector<2x96xf32>
      %70 = arith.addf %66, %69 : vector<2x96xf32>
      %c0_49 = arith.constant 0 : index
      %c32_50 = arith.constant 32 : index
      %71 = vector.load %arg13[%c0_49, %c32_50] : memref<2x128xf32, #tpu.memory_space<vmem>>, vector<2x96xf32>
      %72 = vector.broadcast %6 : vector<1x96xf32> to vector<2x96xf32>
      %73 = arith.addf %71, %72 : vector<2x96xf32>
      %74 = vector.extract_strided_slice %70 {offsets = [0, 0], sizes = [2, 32], strides = [1, 1]} : vector<2x96xf32> to vector<2x32xf32>
      %75 = vector.extract_strided_slice %73 {offsets = [0, 0], sizes = [2, 32], strides = [1, 1]} : vector<2x96xf32> to vector<2x32xf32>
      %76 = arith.addf %74, %75 : vector<2x32xf32>
      %77 = arith.negf %76 : vector<2x32xf32>
      %78 = math.exp %77 : vector<2x32xf32>
      %cst_51 = arith.constant 1.000000e+00 : f32
      %79 = vector.broadcast %cst_51 : f32 to vector<2x32xf32>
      %80 = arith.addf %79, %78 : vector<2x32xf32>
      %81 = arith.divf %79, %80 : vector<2x32xf32>
      %82 = vector.extract_strided_slice %70 {offsets = [0, 32], sizes = [2, 32], strides = [1, 1]} : vector<2x96xf32> to vector<2x32xf32>
      %83 = vector.extract_strided_slice %73 {offsets = [0, 32], sizes = [2, 32], strides = [1, 1]} : vector<2x96xf32> to vector<2x32xf32>
      %84 = arith.addf %82, %83 : vector<2x32xf32>
      %85 = arith.negf %84 : vector<2x32xf32>
      %86 = math.exp %85 : vector<2x32xf32>
      %cst_52 = arith.constant 1.000000e+00 : f32
      %87 = vector.broadcast %cst_52 : f32 to vector<2x32xf32>
      %88 = arith.addf %87, %86 : vector<2x32xf32>
      %89 = arith.divf %87, %88 : vector<2x32xf32>
      %90 = vector.extract_strided_slice %70 {offsets = [0, 64], sizes = [2, 32], strides = [1, 1]} : vector<2x96xf32> to vector<2x32xf32>
      %91 = vector.extract_strided_slice %73 {offsets = [0, 64], sizes = [2, 32], strides = [1, 1]} : vector<2x96xf32> to vector<2x32xf32>
      %92 = arith.mulf %81, %91 : vector<2x32xf32>
      %93 = arith.addf %90, %92 : vector<2x32xf32>
      %94 = math.tanh %93 : vector<2x32xf32>
      %cst_53 = arith.constant 1.000000e+00 : f32
      %95 = vector.broadcast %cst_53 : f32 to vector<2x32xf32>
      %96 = arith.subf %95, %89 : vector<2x32xf32>
      %97 = arith.mulf %96, %94 : vector<2x32xf32>
      %98 = arith.mulf %89, %1 : vector<2x32xf32>
      %99 = arith.addf %97, %98 : vector<2x32xf32>
      %c0_54 = arith.constant 0 : index
      %c0_55 = arith.constant 0 : index
      %100 = vector.load %arg10[%c0_54, %c0_55] : memref<2x32xf32, #tpu.memory_space<vmem>>, vector<2x32xf32>
      tpu.vector_store %arg10[%c0_54, %c0_55], %99 {strides = array<i32>} : memref<2x32xf32, #tpu.memory_space<vmem>>, vector<2x32xf32>,
      %c0_56 = arith.constant 0 : index
      %c0_57 = arith.constant 0 : index
      %101 = vector.load %arg11[%c0_56, %c0_57] : memref<2x32xf32, #tpu.memory_space<vmem>>, vector<2x32xf32>
      tpu.vector_store %arg11[%c0_56, %c0_57], %65 {strides = array<i32>} : memref<2x32xf32, #tpu.memory_space<vmem>>, vector<2x32xf32>,
      %c0_58 = arith.constant 0 : index
      %c0_59 = arith.constant 0 : index
      %c0_60 = arith.constant 0 : index
      %102 = vector.load %arg18[%c0_58, %c0_59, %c0_60] : memref<1x2x8xf32, #tpu.memory_space<vmem>>, vector<1x2x8xf32>
      %103 = vector.shape_cast %102 : vector<1x2x8xf32> to vector<2x8xf32>
      %104 = vector.broadcast %62 : vector<2x1xf32> to vector<2x8xf32>
      %105 = arith.subf %103, %104 : vector<2x8xf32>
      %106 = math.exp %105 : vector<2x8xf32>
      %107 = vector.broadcast %61 : vector<2x1xf32> to vector<2x8xf32>
      %108 = arith.mulf %106, %107 : vector<2x8xf32>
      %c0_61 = arith.constant 0 : index
      %c0_62 = arith.constant 0 : index
      %109 = vector.load %arg12[%c0_61, %c0_62] : memref<2x8xf32, #tpu.memory_space<vmem>>, vector<2x8xf32>
      tpu.vector_store %arg12[%c0_61, %c0_62], %108 {strides = array<i32>} : memref<2x8xf32, #tpu.memory_space<vmem>>, vector<2x8xf32>,
    } else {
    }
    return
  }
  func.func @transform_0(%arg0: i32, %arg1: i32) -> (i32, i32) {
    %c0_i32 = arith.constant 0 : i32
    %c0_i32_0 = arith.constant 0 : i32
    return %arg0, %c0_i32 : i32, i32
  }
  func.func @transform_1(%arg0: i32, %arg1: i32) -> (i32, i32) {
    %c0_i32 = arith.constant 0 : i32
    %c0_i32_0 = arith.constant 0 : i32
    return %arg0, %c0_i32 : i32, i32
  }
  func.func @transform_2(%arg0: i32, %arg1: i32) -> (i32, i32, i32) {
    %c0_i32 = arith.constant 0 : i32
    %c0_i32_0 = arith.constant 0 : i32
    return %arg0, %arg1, %c0_i32 : i32, i32, i32
  }
  func.func @transform_3(%arg0: i32, %arg1: i32) -> (i32, i32) {
    %c0_i32 = arith.constant 0 : i32
    %c0_i32_0 = arith.constant 0 : i32
    %c0_i32_1 = arith.constant 0 : i32
    return %c0_i32, %c0_i32_0 : i32, i32
  }
  func.func @transform_4(%arg0: i32, %arg1: i32) -> (i32, i32) {
    %c0_i32 = arith.constant 0 : i32
    %c0_i32_0 = arith.constant 0 : i32
    %c0_i32_1 = arith.constant 0 : i32
    return %c0_i32, %c0_i32_0 : i32, i32
  }
  func.func @transform_5(%arg0: i32, %arg1: i32) -> (i32, i32) {
    %c0_i32 = arith.constant 0 : i32
    %c0_i32_0 = arith.constant 0 : i32
    %c0_i32_1 = arith.constant 0 : i32
    return %c0_i32, %c0_i32_0 : i32, i32
  }
  func.func @transform_6(%arg0: i32, %arg1: i32) -> (i32, i32) {
    %c0_i32 = arith.constant 0 : i32
    %c0_i32_0 = arith.constant 0 : i32
    %c0_i32_1 = arith.constant 0 : i32
    return %c0_i32, %c0_i32_0 : i32, i32
  }
  func.func @transform_7(%arg0: i32, %arg1: i32) -> (i32, i32) {
    %c0_i32 = arith.constant 0 : i32
    %c0_i32_0 = arith.constant 0 : i32
    %c0_i32_1 = arith.constant 0 : i32
    return %c0_i32, %c0_i32_0 : i32, i32
  }
  func.func @transform_8(%arg0: i32, %arg1: i32) -> (i32, i32) {
    %c0_i32 = arith.constant 0 : i32
    %c0_i32_0 = arith.constant 0 : i32
    return %arg0, %c0_i32 : i32, i32
  }
  func.func @transform_9(%arg0: i32, %arg1: i32) -> (i32, i32) {
    %c0_i32 = arith.constant 0 : i32
    %c0_i32_0 = arith.constant 0 : i32
    return %arg0, %c0_i32 : i32, i32
  }
  func.func @transform_10(%arg0: i32, %arg1: i32) -> (i32, i32) {
    %c0_i32 = arith.constant 0 : i32
    %c0_i32_0 = arith.constant 0 : i32
    return %arg0, %c0_i32 : i32, i32
  }
}

</mosaic_0001>

<llo_original>
// kernel: tpu_custom_call.1
$region0: #{tpu_custom_call.1}
  #allocation0 [shape = 'u32[]', space=smem, size = 0x4, offset = 0x4, fixed_abs, tag = 'smem constant byte address 0x4 - core index']
  #allocation1 [shape = 'u32[72,128]{1,0:T(1,128)}', space=vmem, size = 0x9000, scoped, tag = 'internal scratch']
  #allocation2 [shape = 'f32[2,128]{1,0:T(2,128)}', space=vmem, size = 0x400, scoped, tag = 'scratch operand']
  #allocation3 [shape = 'f32[2,96]{1,0:T(2,128)}', space=vmem, size = 0x400, scoped, tag = 'scratch operand']
  #allocation4 [shape = 'f32[2,1]{1,0:T(2,128)}', space=vmem, size = 0x400, scoped, tag = 'scratch operand']
  #allocation5 [shape = 'f32[2,1]{1,0:T(2,128)}', space=vmem, size = 0x400, scoped, tag = 'scratch operand']
  #allocation6 [shape = 'f32[2,32]{1,0:T(2,128)}', space=vmem, size = 0x400, scoped, tag = 'scratch operand']
  #allocation7 [shape = 'f32[1,2,8]{2,1,0:T(2,128)}', space=vmem, size = 0x400, scoped, tag = 'scratch operand']
  %s0 = inlined_call_operand.hbm [shape: f32[2,32], index: 0, kind: input, shape index: {}]
  %s1 = inlined_call_operand.hbm [shape: f32[2,32], index: 1, kind: input, shape index: {}]
  %s2 = inlined_call_operand.hbm [shape: bf16[2,8,32], index: 2, kind: input, shape index: {}]
  %s3 = inlined_call_operand.hbm [shape: bf16[32,128], index: 3, kind: input, shape index: {}]
  %s4 = inlined_call_operand.hbm [shape: bf16[32,32], index: 4, kind: input, shape index: {}]
  %s5 = inlined_call_operand.hbm [shape: bf16[64,96], index: 5, kind: input, shape index: {}]
  %s6 = inlined_call_operand.vmem [shape: f32[2,32], index: 6, kind: input, shape index: {}]
  %s7 = inlined_call_operand.vmem [shape: f32[2,96], index: 7, kind: input, shape index: {}]
  %s8 = inlined_call_operand.hbm [shape: f32[2,32], index: 8, kind: output, shape index: {0}]
  %s9 = inlined_call_operand.hbm [shape: f32[2,32], index: 9, kind: output, shape index: {1}]
  %s10 = inlined_call_operand.hbm [shape: f32[2,8], index: 10, kind: output, shape index: {2}]
  %11 = xla_tuple %s8, %s9, %s10
  %s12 = sld [smem:[#allocation0]]
  $region90: #{tpu_custom_call.1} parent=0
    _
  %s14 = ssub.s32 1, %s12
  %s15 = scalar_select 0, %s14, %s12
  $region1: #{tpu_custom_call.1} parent=0
    #allocation8 [shape = 'u8[1024]{0}', space=vmem, size = 0x400, scoped, tag = 'input window, operand 0, single buffered']
    #allocation9 [shape = 's32[1]{0}', space=sflag, size = 0x4, scoped, tag = 'scoped memory for tpu_custom_call.1']
    #allocation10 [shape = 's32[1]{0}', space=sflag, size = 0x4, scoped, tag = 'scoped memory for tpu_custom_call.1']
    #allocation11 [shape = 'u8[1024]{0}', space=vmem, size = 0x400, scoped, tag = 'input window, operand 1, single buffered']
    #allocation12 [shape = 's32[1]{0}', space=sflag, size = 0x4, scoped, tag = 'scoped memory for tpu_custom_call.1']
    #allocation13 [shape = 'u8[4096]{0}', space=vmem, size = 0x1000, scoped, tag = 'input window, operand 2, single buffered']
    #allocation14 [shape = 'u8[8192]{0}', space=vmem, size = 0x2000, scoped, tag = 'input window, operand 3, single buffered']
    #allocation15 [shape = 's32[1]{0}', space=sflag, size = 0x4, scoped, tag = 'scoped memory for tpu_custom_call.1']
    #allocation16 [shape = 'u8[8192]{0}', space=vmem, size = 0x2000, scoped, tag = 'input window, operand 4, single buffered']
    #allocation17 [shape = 'u8[16384]{0}', space=vmem, size = 0x4000, scoped, tag = 'input window, operand 5, single buffered']
    #allocation18 [shape = 's32[1]{0}', space=sflag, size = 0x4, scoped, tag = 'scoped memory for tpu_custom_call.1']
    #allocation19 [shape = 'u8[1024]{0}', space=vmem, size = 0x400, scoped, tag = 'output window, operand 0, single buffered']
    #allocation20 [shape = 'u8[1024]{0}', space=vmem, size = 0x400, scoped, tag = 'output window, operand 1, single buffered']
    #allocation21 [shape = 's32[1]{0}', space=sflag, size = 0x4, scoped, tag = 'scoped memory for tpu_custom_call.1']
    #allocation22 [shape = 'u8[1024]{0}', space=vmem, size = 0x400, scoped, tag = 'output window, operand 2, single buffered']
    %16 = vsyncpa [#allocation9], 0
    %17 = vsyncpa [#allocation12], 0
    %18 = vsyncpa [#allocation15], 0
    %19 = vsyncpa [#allocation18], 0
    %20 = vsyncpa [#allocation10], 0
    %21 = vsyncpa [#allocation21], 0
    // Predicated region
    $region2: #{tpu_custom_call.1} parent=1 // pred_check
      _
    $region3: #{tpu_custom_call.1} parent=1 // pred_check_branch
      %23 = sbr.rel (0) target = $region5
    $region4: #{tpu_custom_call.1} parent=1 // pred_region
      %25 = vsyncadd [#allocation9], 0
      %s27 = sshll.u32 %s0, 4
      %s28 = int_to_ptr.hbm [resolvable:$true] %s27
      %s29 = sshll.u32 [#allocation8], 4
      %s30 = int_to_ptr.vmem [resolvable:$true] %s29
      %32 = dma.hbm_to_vmem [thread:$0]  %s28, 32, %s30, [#allocation9]
    $region5: #{tpu_custom_call.1} parent=1 // pred_fallthru
      _
    // Predicated region
    $region6: #{tpu_custom_call.1} parent=1 // pred_check
      _
    $region7: #{tpu_custom_call.1} parent=1 // pred_check_branch
      %34 = sbr.rel (0) target = $region9
    $region8: #{tpu_custom_call.1} parent=1 // pred_region
      %36 = vsyncadd [#allocation12], 0
      %s38 = sshll.u32 %s1, 4
      %s39 = int_to_ptr.hbm [resolvable:$true] %s38
      %s40 = sshll.u32 [#allocation11], 4
      %s41 = int_to_ptr.vmem [resolvable:$true] %s40
      %43 = dma.hbm_to_vmem [thread:$0]  %s39, 32, %s41, [#allocation12]
    $region9: #{tpu_custom_call.1} parent=1 // pred_fallthru
      _
    // Predicated region
    $region10: #{tpu_custom_call.1} parent=1 // pred_check
      _
    $region11: #{tpu_custom_call.1} parent=1 // pred_check_branch
      %45 = sbr.rel (0) target = $region13
    $region12: #{tpu_custom_call.1} parent=1 // pred_region
      %47 = vsyncadd [#allocation12], 0
      %s48 = sshll.u32 %s2, 4
      %s49 = int_to_ptr.hbm [resolvable:$true] %s48
      %s50 = sshll.u32 [#allocation13], 4
      %s51 = int_to_ptr.vmem [resolvable:$true] %s50
      %56 = dma.hbm_to_vmem [thread:$0]  %s49, 128, %s51, [#allocation12], 64, 64, 4
    $region13: #{tpu_custom_call.1} parent=1 // pred_fallthru
      _
    // Predicated region
    $region14: #{tpu_custom_call.1} parent=1 // pred_check
      _
    $region15: #{tpu_custom_call.1} parent=1 // pred_check_branch
      %58 = sbr.rel (0) target = $region17
    $region16: #{tpu_custom_call.1} parent=1 // pred_region
      %60 = vsyncadd [#allocation15], 0
      %s61 = sshll.u32 %s3, 4
      %s62 = int_to_ptr.hbm [resolvable:$true] %s61
      %s63 = sshll.u32 [#allocation14], 4
      %s64 = int_to_ptr.vmem [resolvable:$true] %s63
      %69 = dma.hbm_to_vmem [thread:$0]  %s62, 256, %s64, [#allocation15], 64, 64, 4
    $region17: #{tpu_custom_call.1} parent=1 // pred_fallthru
      _
    // Predicated region
    $region18: #{tpu_custom_call.1} parent=1 // pred_check
      _
    $region19: #{tpu_custom_call.1} parent=1 // pred_check_branch
      %71 = sbr.rel (0) target = $region21
    $region20: #{tpu_custom_call.1} parent=1 // pred_region
      %73 = vsyncadd [#allocation15], 0
      %s74 = sshll.u32 %s4, 4
      %s75 = int_to_ptr.hbm [resolvable:$true] %s74
      %s76 = sshll.u32 [#allocation16], 4
      %s77 = int_to_ptr.vmem [resolvable:$true] %s76
      %82 = dma.hbm_to_vmem [thread:$0]  %s75, 256, %s77, [#allocation15], 64, 64, 4
    $region21: #{tpu_custom_call.1} parent=1 // pred_fallthru
      _
    // Predicated region
    $region22: #{tpu_custom_call.1} parent=1 // pred_check
      _
    $region23: #{tpu_custom_call.1} parent=1 // pred_check_branch
      %84 = sbr.rel (0) target = $region25
    $region24: #{tpu_custom_call.1} parent=1 // pred_region
      %86 = vsyncadd [#allocation18], 0
      %s87 = sshll.u32 %s5, 4
      %s88 = int_to_ptr.hbm [resolvable:$true] %s87
      %s89 = sshll.u32 [#allocation17], 4
      %s90 = int_to_ptr.vmem [resolvable:$true] %s89
      %95 = dma.hbm_to_vmem [thread:$0]  %s88, 512, %s90, [#allocation18], 64, 64, 4
    $region25: #{tpu_custom_call.1} parent=1 // pred_fallthru
      _
    // Predicated region
    $region26: #{tpu_custom_call.1} parent=1 // pred_check
      _
    $region27: #{tpu_custom_call.1} parent=1 // pred_check_branch
      %97 = sbr.rel (0) target = $region29
    $region28: #{tpu_custom_call.1} parent=1 // pred_region
      _
    $region29: #{tpu_custom_call.1} parent=1 // pred_fallthru
      _
    // Predicated region
    $region30: #{tpu_custom_call.1} parent=1 // pred_check
      _
    $region31: #{tpu_custom_call.1} parent=1 // pred_check_branch
      %99 = sbr.rel (0) target = $region33
    $region32: #{tpu_custom_call.1} parent=1 // pred_region
      _
    $region33: #{tpu_custom_call.1} parent=1 // pred_fallthru
      _
    // Predicated region
    $region34: #{tpu_custom_call.1} parent=1 // pred_check
      _
    $region35: #{tpu_custom_call.1} parent=1 // pred_check_branch
      %101 = sbr.rel (0) target = $region37
    $region36: #{tpu_custom_call.1} parent=1 // pred_region
      %103 = dma.done [#allocation9], 32
    $region37: #{tpu_custom_call.1} parent=1 // pred_fallthru
      _
    // Predicated region
    $region38: #{tpu_custom_call.1} parent=1 // pred_check
      _
    $region39: #{tpu_custom_call.1} parent=1 // pred_check_branch
      %105 = sbr.rel (0) target = $region41
    $region40: #{tpu_custom_call.1} parent=1 // pred_region
      %107 = dma.done [#allocation12], 32
    $region41: #{tpu_custom_call.1} parent=1 // pred_fallthru
      _
    // Predicated region
    $region42: #{tpu_custom_call.1} parent=1 // pred_check
      _
    $region43: #{tpu_custom_call.1} parent=1 // pred_check_branch
      %109 = sbr.rel (0) target = $region45
    $region44: #{tpu_custom_call.1} parent=1 // pred_region
      %111 = dma.done [#allocation12], 128
    $region45: #{tpu_custom_call.1} parent=1 // pred_fallthru
      _
    // Predicated region
    $region46: #{tpu_custom_call.1} parent=1 // pred_check
      _
    $region47: #{tpu_custom_call.1} parent=1 // pred_check_branch
      %113 = sbr.rel (0) target = $region49
    $region48: #{tpu_custom_call.1} parent=1 // pred_region
      %115 = dma.done [#allocation15], 256
    $region49: #{tpu_custom_call.1} parent=1 // pred_fallthru
      _
    // Predicated region
    $region50: #{tpu_custom_call.1} parent=1 // pred_check
      _
    $region51: #{tpu_custom_call.1} parent=1 // pred_check_branch
      %117 = sbr.rel (0) target = $region53
    $region52: #{tpu_custom_call.1} parent=1 // pred_region
      %119 = dma.done [#allocation15], 256
    $region53: #{tpu_custom_call.1} parent=1 // pred_fallthru
      _
    // Predicated region
    $region54: #{tpu_custom_call.1} parent=1 // pred_check
      _
    $region55: #{tpu_custom_call.1} parent=1 // pred_check_branch
      %121 = sbr.rel (0) target = $region57
    $region56: #{tpu_custom_call.1} parent=1 // pred_region
      %123 = dma.done [#allocation18], 512
    $region57: #{tpu_custom_call.1} parent=1 // pred_fallthru
      _
    %v125 = vld [vmem:[#allocation8] sm:$0x3]
    %v126 = vld [vmem:[#allocation11] sm:$0x3]
    %v127 = vld [vmem:[#allocation13] sm:$0xf]
    %v128 = vld [vmem:[#allocation13 + $0x4] sm:$0xf]
    %v129 = vld [vmem:[%s6] sm:$0x1]
    %v130 = vld [vmem:[%s6 + $0x1] sm:$0x1]
    %v131 = vld [vmem:[%s7] sm:$0x1]
    %v132 = vld [vmem:[%s7 + $0x1] sm:$0x1]
    %p133 = scmp.eq.s32.totalorder 0, 0
    // Predicated region
    $region58: #{tpu_custom_call.1} parent=1 // pred_check
      %p134 = pneg %p133
    $region59: #{tpu_custom_call.1} parent=1 // pred_check_branch
      %136 = sbr.rel (%p134) target = $region61
    $region60: #{tpu_custom_call.1} parent=1 // pred_region
      %v137 = vpack.c.bf16 %v126, %v126
      %v138 = vld [vmem:[#allocation14] sm:$0xf]
      %v139 = vld [vmem:[#allocation14 + $0x4] sm:$0xf]
      %v140 = vld [vmem:[#allocation14 + $0x8] sm:$0xf]
      %v141 = vld [vmem:[#allocation14 + $0xc] sm:$0xf]
      %v146 = vunpack.c.l.b16 %v138
      %v147 = vunpack.c.l.b16 %v139
      %v148 = vunpack.c.l.b16 %v140
      %v149 = vunpack.c.l.b16 %v141
      %v150 = vpack.c.b16 %v147, %v146
      %v151 = vpack.c.b16 %v149, %v148
      %vm154 = vcmask 261120
      %v156 = vsel %vm154, %v137, 0
      %158 = vmatpush.bf16.msra.mxu0 0
      %159 = vmatpush.bf16.msra.mxu0 0
      %160 = vmatpush.bf16.msra.mxu0 0
      %161 = vmatpush.bf16.msra.mxu0 0
      %162 = vmatpush.bf16.msra.mxu0 0
      %163 = vmatpush.bf16.msra.mxu0 0
      %164 = vmatpush.bf16.msra.mxu0 %v151
      %165 = vmatpush.bf16.msra.mxu0 %v150
      %166 = vmatmul.bf16.gmra.mxu0 %v156
      %v167 = vpop.f32.mrf.mxu0
      %v168 = vadd.f32 0.0, %v167
      %v169 = vpop.f32.mrf.mxu0
      %170 = vdwg.mxu0
      %171 = vst [vmem:[#allocation2] sm:$0x3] %v168
      %v172 = vpack.c.bf16 %v125, %v125
      %v173 = vld [vmem:[#allocation17] sm:$0xf]
      %v174 = vld [vmem:[#allocation17 + $0x4] sm:$0xf]
      %v175 = vld [vmem:[#allocation17 + $0x8] sm:$0xf]
      %v176 = vld [vmem:[#allocation17 + $0xc] sm:$0xf]
      %v177 = vperm.slane %v131, 0
      %v182 = vunpack.c.l.b16 %v173
      %v183 = vunpack.c.l.b16 %v174
      %v184 = vunpack.c.l.b16 %v175
      %v185 = vunpack.c.l.b16 %v176
      %v186 = vpack.c.b16 %v183, %v182
      %v187 = vpack.c.b16 %v185, %v184
      %v191 = vsel %vm154, %v172, 0
      %193 = vmatpush.bf16.msra.mxu0 0
      %194 = vmatpush.bf16.msra.mxu0 0
      %195 = vmatpush.bf16.msra.mxu0 0
      %196 = vmatpush.bf16.msra.mxu0 0
      %197 = vmatpush.bf16.msra.mxu0 0
      %198 = vmatpush.bf16.msra.mxu0 0
      %199 = vmatpush.bf16.msra.mxu0 %v187
      %200 = vmatpush.bf16.msra.mxu0 %v186
      %201 = vmatmul.bf16.gmra.mxu0 %v191
      %v202 = vpop.f32.mrf.mxu0
      %v203 = vadd.f32 %v177, %v202
      %v204 = vpop.f32.mrf.mxu0
      %205 = vdwg.mxu0
      %vm206 = vcmask 779264
      %207 = vst.msk [vmem:[#allocation3] sm:$0x3] %vm206, %v203
      %vm208 = vcmask 1024
      %209 = vst.msk [vmem:[#allocation4] sm:$0x3] %vm208, -inf
      %210 = vst.msk [vmem:[#allocation5] sm:$0x3] %vm208, 0.0
      %vm211 = vcmask 254976
      %212 = vst.msk [vmem:[#allocation6] sm:$0x3] %vm211, 0.0
    $region61: #{tpu_custom_call.1} parent=1 // pred_fallthru
      _
    %v213 = vld [vmem:[#allocation16] sm:$0xf]
    %v214 = vld [vmem:[#allocation16 + $0x4] sm:$0xf]
    %v215 = vld [vmem:[#allocation16 + $0x8] sm:$0xf]
    %v216 = vld [vmem:[#allocation16 + $0xc] sm:$0xf]
    %v219 = vunpack.c.l.b16 %v127
    %v220 = vunpack.c.l.b16 %v128
    %v221 = vpack.c.b16 %v220, %v219
    %v226 = vunpack.c.l.b16 %v213
    %v227 = vunpack.c.l.b16 %v214
    %v228 = vunpack.c.l.b16 %v215
    %v229 = vunpack.c.l.b16 %v216
    %v230 = vpack.c.b16 %v227, %v226
    %v231 = vpack.c.b16 %v229, %v228
    %vm234 = vcmask 261120
    %v236 = vsel %vm234, %v221, 0
    %238 = vmatpush.bf16.msra.mxu0 0
    %239 = vmatpush.bf16.msra.mxu0 0
    %240 = vmatpush.bf16.msra.mxu0 0
    %241 = vmatpush.bf16.msra.mxu0 0
    %242 = vmatpush.bf16.msra.mxu0 0
    %243 = vmatpush.bf16.msra.mxu0 0
    %244 = vmatpush.bf16.msra.mxu0 %v231
    %245 = vmatpush.bf16.msra.mxu0 %v230
    %246 = vmatmul.bf16.gmra.mxu0 %v236
    %v247 = vpop.f32.mrf.mxu0
    %v248 = vadd.f32 0.0, %v247
    %v249 = vpop.f32.mrf.mxu0
    %v250 = vadd.f32 0.0, %v249
    %251 = vdwg.mxu0
    %v252 = vld [vmem:[#allocation2] sm:$0x3]
    %v254 = vrot.slane %v252, 1
    %v255 = vperm.slane %v252, 0
    %v256 = vperm.slane %v254, 0
    %v259 = vadd.f32 %v255, %v248
    %v260 = vadd.f32 %v256, %v250
    %v261 = vperm.slane %v130, 0
    %v262 = vadd.f32 %v259, %v261
    %v263 = vadd.f32 %v260, %v261
    %v264 = vtanh.pop %v262
    %v265 = vtanh.pop %v263
    %v266 = vperm.slane %v129, 0
    %v267 = vmul.f32 %v264, %v266
    %v268 = vmul.f32 %v265, %v266
    %v269 = vsel %vm234, %v267, 0.0
    %270 = vadd.xlane.f32.xlu0 %v269
    %v271 = vpop.xlane.xlu0 %270
    %v272 = vsel %vm234, %v268, 0.0
    %273 = vadd.xlane.f32.xlu0 %v272
    %v274 = vpop.xlane.xlu0 %273
    %v277 = vlaneseq
    %v278 = vand.u32 %v277, 127
    %v279 = vperm.slane %v271, %v278
    %v280 = vperm.slane %v274, %v278
    %vm281 = vcmask 1041409
    %v282 = vsel %vm281, %v280, %v279
    %s284 = smul.u32 0, 2
    %s285 = scalar_lea.vmem [#allocation7], %s284
    %vm286 = vcmask 58368
    %287 = vst.msk [vmem:[%s285] sm:$0x3] %vm286, %v282
    %v288 = vld [vmem:[#allocation4] sm:$0x3]
    %v289 = vsel %vm286, %v282, -inf
    %290 = vmax.xlane.f32.xlu0 %v289
    %v291 = vpop.xlane.xlu0 %290
    %v292 = vmax.f32 %v288, %v291
    %v293 = vsub.f32 %v288, %v292
    %v294 = vmul.f32 %v293, 1.442695
    %v295 = vpow.pop %v294
    %297 = vset.pattern.permute.xlu0 0
    %298 = vperm.xlu0 %297, %v292
    %v299 = vpop.permute.xlu0 %298
    %v300 = vperm.slane %v299, 0
    %v301 = vperm.slane %v299, 1
    %v304 = vsub.f32 %v271, %v300
    %v305 = vsub.f32 %v274, %v301
    %v306 = vmul.f32 %v304, 1.442695
    %v307 = vpow.pop %v306
    %v308 = vmul.f32 %v305, 1.442695
    %v309 = vpow.pop %v308
    %v310 = vld [vmem:[#allocation5] sm:$0x3]
    %v311 = vmul.f32 %v295, %v310
    %314 = vset.pattern.permute.xlu0 0
    %315 = vperm.xlu0 %314, %v307
    %v316 = vpop.permute.xlu0 %315
    %317 = vset.pattern.permute.xlu0 0
    %318 = vperm.xlu0 %317, %v309
    %v319 = vpop.permute.xlu0 %318
    %v320 = vperm.slane %v316, %v278
    %v321 = vperm.slane %v319, %v278
    %v322 = vsel %vm281, %v321, %v320
    %v324 = vsel %vm286, %v322, 0.0
    %325 = vadd.xlane.f32.xlu0 %v324
    %v326 = vpop.xlane.xlu0 %325
    %v327 = vadd.f32 %v311, %v326
    %vm328 = vcmask 1024
    %329 = vst.msk [vmem:[#allocation5] sm:$0x3] %vm328, %v327
    %v330 = vld [vmem:[#allocation6] sm:$0x3]
    %332 = vset.pattern.permute.xlu0 0
    %333 = vperm.xlu0 %332, %v295
    %v334 = vpop.permute.xlu0 %333
    %v336 = vmul.f32 %v334, %v330
    %v337 = vunpack.c.l.bf16 %v127
    %v338 = vunpack.c.l.bf16 %v128
    %v341 = vmul.f32 %v316, %v337
    %v342 = vmul.f32 %v319, %v338
    %v343 = vsel %vm234, %v341, 0.0
    %v344 = vrot.slane %v343, 4
    %v345 = vadd.f32 %v343, %v344
    %v346 = vrot.slane %v345, 2
    %v347 = vadd.f32 %v345, %v346
    %v348 = vrot.slane %v347, 1
    %v349 = vadd.f32 %v347, %v348
    %v350 = vsel %vm234, %v342, 0.0
    %v351 = vrot.slane %v350, 4
    %v352 = vadd.f32 %v350, %v351
    %v353 = vrot.slane %v352, 2
    %v354 = vadd.f32 %v352, %v353
    %v355 = vrot.slane %v354, 1
    %v356 = vadd.f32 %v354, %v355
    %v359 = vsel %vm281, %v356, %v349
    %v361 = vadd.f32 %v336, %v359
    %vm362 = vcmask 254976
    %363 = vst.msk [vmem:[#allocation6] sm:$0x3] %vm362, %v361
    %364 = vst.msk [vmem:[#allocation4] sm:$0x3] %vm328, %v292
    // Predicated region
    $region62: #{tpu_custom_call.1} parent=1 // pred_check
      %p365 = pneg %p133
    $region63: #{tpu_custom_call.1} parent=1 // pred_check_branch
      %367 = sbr.rel (%p365) target = $region65
    $region64: #{tpu_custom_call.1} parent=1 // pred_region
      %v368 = vld [vmem:[#allocation5] sm:$0x3]
      %v369 = vrcp.pop %v368
      %v370 = vmul.f32 %v368, %v369
      %v371 = vsub.f32 1.0, %v370
      %v372 = vmul.f32 %v369, %v371
      %v373 = vadd.f32 %v369, %v372
      %vm374 = vweird.f32 %v368
      %vm375 = vweird.f32 %v369
      %vm376 = vmor %vm374, %vm375
      %v377 = vsel %vm376, %v369, %v373
      %v378 = vand.u32 2147483647, %v368
      %vm379 = vcmp.eq.f32.partialorder %v378, 8.507059e+37
      %v380 = vand.u32 %v368, 2147483648
      %v381 = vor.u32 1.1754944e-38, %v380
      %v382 = vsel %vm379, %v381, %v377
      %v383 = vmul.f32 1.0, %v382
      %v384 = vld [vmem:[#allocation4] sm:$0x3]
      %v385 = vld [vmem:[#allocation6] sm:$0x3]
      %387 = vset.pattern.permute.xlu0 0
      %388 = vperm.xlu0 %387, %v383
      %v389 = vpop.permute.xlu0 %388
      %v391 = vmul.f32 %v385, %v389
      %v392 = vld [vmem:[#allocation3] sm:$0x3]
      %v393 = vpack.c.bf16 %v391, %v391
      %v394 = vld [vmem:[#allocation17 + $0x10] sm:$0xf]
      %v395 = vld [vmem:[#allocation17 + $0x14] sm:$0xf]
      %v396 = vld [vmem:[#allocation17 + $0x18] sm:$0xf]
      %v397 = vld [vmem:[#allocation17 + $0x1c] sm:$0xf]
      %v402 = vunpack.c.l.b16 %v394
      %v403 = vunpack.c.l.b16 %v395
      %v404 = vunpack.c.l.b16 %v396
      %v405 = vunpack.c.l.b16 %v397
      %v406 = vpack.c.b16 %v403, %v402
      %v407 = vpack.c.b16 %v405, %v404
      %v411 = vsel %vm234, %v393, 0
      %413 = vmatpush.bf16.msra.mxu0 0
      %414 = vmatpush.bf16.msra.mxu0 0
      %415 = vmatpush.bf16.msra.mxu0 0
      %416 = vmatpush.bf16.msra.mxu0 0
      %417 = vmatpush.bf16.msra.mxu0 0
      %418 = vmatpush.bf16.msra.mxu0 0
      %419 = vmatpush.bf16.msra.mxu0 %v407
      %420 = vmatpush.bf16.msra.mxu0 %v406
      %421 = vmatmul.bf16.gmra.mxu0 %v411
      %v422 = vpop.f32.mrf.mxu0
      %v423 = vadd.f32 0.0, %v422
      %v424 = vpop.f32.mrf.mxu0
      %425 = vdwg.mxu0
      %v426 = vadd.f32 %v392, %v423
      %v427 = vld [vmem:[#allocation2] sm:$0x3]
      %v428 = vperm.slane %v132, 0
      %430 = vrot.lane.b32.xlu0 %v428, 32
      %v431 = vpop.permute.xlu0 %430
      %v433 = vadd.f32 %v427, %v431
      %435 = vrot.lane.b32.xlu0 %v433, 96
      %v436 = vpop.permute.xlu0 %435
      %v438 = vadd.f32 %v426, %v436
      %v439 = vxor.u32 %v438, 2147483648
      %v440 = vmul.f32 %v439, 1.442695
      %v441 = vpow.pop %v440
      %v442 = vadd.f32 %v441, 1.0
      %v443 = vrcp.pop %v442
      %v444 = vmul.f32 %v442, %v443
      %v445 = vsub.f32 1.0, %v444
      %v446 = vmul.f32 %v443, %v445
      %v447 = vadd.f32 %v443, %v446
      %vm448 = vweird.f32 %v442
      %vm449 = vweird.f32 %v443
      %vm450 = vmor %vm448, %vm449
      %v451 = vsel %vm450, %v443, %v447
      %v452 = vand.u32 2147483647, %v442
      %vm453 = vcmp.eq.f32.partialorder %v452, 8.507059e+37
      %v454 = vand.u32 %v442, 2147483648
      %v455 = vor.u32 1.1754944e-38, %v454
      %v456 = vsel %vm453, %v455, %v451
      %v457 = vmul.f32 1.0, %v456
      %458 = vrot.lane.b32.xlu0 %v433, 32
      %v459 = vpop.permute.xlu0 %458
      %v461 = vmul.f32 %v457, %v459
      %463 = vrot.lane.b32.xlu0 %v461, 64
      %v464 = vpop.permute.xlu0 %463
      %v466 = vadd.f32 %v426, %v464
      %v467 = vtanh.pop %v466
      %v468 = vsub.f32 1.0, %v457
      %470 = vrot.lane.b32.xlu0 %v467, 96
      %v471 = vpop.permute.xlu0 %470
      %v473 = vmul.f32 %v468, %v471
      %475 = vrot.lane.b32.xlu0 %v126, 32
      %v476 = vpop.permute.xlu0 %475
      %v478 = vmul.f32 %v457, %v476
      %v479 = vadd.f32 %v473, %v478
      %481 = vrot.lane.b32.xlu0 %v479, 96
      %v482 = vpop.permute.xlu0 %481
      %484 = vst.msk [vmem:[#allocation19] sm:$0x3] %vm362, %v482
      %485 = vst.msk [vmem:[#allocation20] sm:$0x3] %vm362, %v391
      %v486 = vld [vmem:[#allocation7] sm:$0x3]
      %488 = vset.pattern.permute.xlu0 0
      %489 = vperm.xlu0 %488, %v384
      %v490 = vpop.permute.xlu0 %489
      %v492 = vsub.f32 %v486, %v490
      %v493 = vmul.f32 %v492, 1.442695
      %v494 = vpow.pop %v493
      %v495 = vmul.f32 %v494, %v389
      %496 = vst.msk [vmem:[#allocation22] sm:$0x3] %vm286, %v495
    $region65: #{tpu_custom_call.1} parent=1 // pred_fallthru
      _
    // Predicated region
    $region66: #{tpu_custom_call.1} parent=1 // pred_check
      _
    $region67: #{tpu_custom_call.1} parent=1 // pred_check_branch
      %498 = sbr.rel (0) target = $region69
    $region68: #{tpu_custom_call.1} parent=1 // pred_region
      %500 = vsyncadd [#allocation10], 0
      %s502 = sshll.u32 [#allocation19], 4
      %s503 = int_to_ptr.vmem [resolvable:$true] %s502
      %s504 = sshll.u32 %s8, 4
      %s505 = int_to_ptr.hbm [resolvable:$true] %s504
      %507 = dma.vmem_to_hbm [thread:$0]  %s503, 32, %s505, [#allocation10]
    $region69: #{tpu_custom_call.1} parent=1 // pred_fallthru
      _
    // Predicated region
    $region70: #{tpu_custom_call.1} parent=1 // pred_check
      _
    $region71: #{tpu_custom_call.1} parent=1 // pred_check_branch
      %509 = sbr.rel (0) target = $region73
    $region72: #{tpu_custom_call.1} parent=1 // pred_region
      %511 = vsyncadd [#allocation21], 0
      %s513 = sshll.u32 [#allocation20], 4
      %s514 = int_to_ptr.vmem [resolvable:$true] %s513
      %s515 = sshll.u32 %s9, 4
      %s516 = int_to_ptr.hbm [resolvable:$true] %s515
      %518 = dma.vmem_to_hbm [thread:$0]  %s514, 32, %s516, [#allocation21]
    $region73: #{tpu_custom_call.1} parent=1 // pred_fallthru
      _
    // Predicated region
    $region74: #{tpu_custom_call.1} parent=1 // pred_check
      _
    $region75: #{tpu_custom_call.1} parent=1 // pred_check_branch
      %520 = sbr.rel (0) target = $region77
    $region76: #{tpu_custom_call.1} parent=1 // pred_region
      %522 = vsyncadd [#allocation21], 0
      %s524 = sshll.u32 [#allocation22], 4
      %s525 = int_to_ptr.vmem [resolvable:$true] %s524
      %s526 = sshll.u32 %s10, 4
      %s527 = int_to_ptr.hbm [resolvable:$true] %s526
      %529 = dma.vmem_to_hbm [thread:$0]  %s525, 32, %s527, [#allocation21]
    $region77: #{tpu_custom_call.1} parent=1 // pred_fallthru
      _
    // Predicated region
    $region78: #{tpu_custom_call.1} parent=1 // pred_check
      _
    $region79: #{tpu_custom_call.1} parent=1 // pred_check_branch
      %531 = sbr.rel (0) target = $region81
    $region80: #{tpu_custom_call.1} parent=1 // pred_region
      %533 = dma.done [#allocation10], 32
    $region81: #{tpu_custom_call.1} parent=1 // pred_fallthru
      _
    // Predicated region
    $region82: #{tpu_custom_call.1} parent=1 // pred_check
      _
    $region83: #{tpu_custom_call.1} parent=1 // pred_check_branch
      %535 = sbr.rel (0) target = $region85
    $region84: #{tpu_custom_call.1} parent=1 // pred_region
      %537 = dma.done [#allocation21], 32
    $region85: #{tpu_custom_call.1} parent=1 // pred_fallthru
      _
    // Predicated region
    $region86: #{tpu_custom_call.1} parent=1 // pred_check
      _
    $region87: #{tpu_custom_call.1} parent=1 // pred_check_branch
      %539 = sbr.rel (0) target = $region89
    $region88: #{tpu_custom_call.1} parent=1 // pred_region
      %541 = dma.done [#allocation21], 32
    $region89: #{tpu_custom_call.1} parent=1 // pred_fallthru
      _
    %542 = vsyncpa [#allocation9], 1
    %543 = vsyncpa [#allocation12], 1
    %544 = vsyncpa [#allocation15], 1
    %545 = vsyncpa [#allocation18], 1
    %546 = vsyncpa [#allocation10], 1
    %547 = vsyncpa [#allocation21], 1

</llo_original>
